<compile_context>
chip_gen: v5e
topology: v5e:2x2
jax: 0.10.0
libtpu: 0.0.40
codegen_flags: <defaults>
</compile_context>

<pallas_src>
import functools

import jax
import jax.numpy as jnp
from jax.experimental import pallas as pl
from jax.experimental.pallas import tpu as pltpu


def _round_up(x, m):
    return (x + m - 1) // m * m


def _pad_to(x, shape):
    pads = [(0, s - d) for d, s in zip(x.shape, shape)]
    return jnp.pad(x, pads)


def _la_agg_kernel(*refs, mode, num_layers):
    if mode == 'att':
        xs_ref, att_w_ref, wT_ref, b_ref, o_ref = refs
    else:
        xs_ref, wT_ref, b_ref, o_ref = refs

    x = xs_ref[...]  # non-'cat': [L, TN, Hp]; 'cat': [TN, L*Hp]; input dtype

    if mode == 'att':
        xf = x.astype(jnp.float32)
        w = att_w_ref[...].astype(jnp.float32)                       # [1, Hp]
        # Note: att bias is a constant shift along the softmax (layer) axis and
        # cancels exactly, so it is omitted here.
        s = jnp.sum(xf * w[None, :, :], axis=-1, keepdims=True)      # [L, TN, 1]
        s = s - jnp.max(s, axis=0, keepdims=True)
        e = jnp.exp(s)
        denom = jnp.sum(e, axis=0, keepdims=True)                    # [1, TN, 1]
        p = e * pl.reciprocal(denom, approx=True)                    # EUP, not VALU div
        agg = jnp.sum(xf * p, axis=0).astype(x.dtype)                # [TN, Hp]
    elif mode == 'max':
        agg = jnp.max(x, axis=0)
    elif mode == 'sum':
        agg = jnp.sum(x, axis=0)
    elif mode == 'mean':
        agg = (jnp.sum(x.astype(jnp.float32), axis=0)
               * (1.0 / num_layers)).astype(x.dtype)
    elif mode == 'cat':
        agg = x                                                      # [TN, L*Hp]
    else:
        raise ValueError(f"unsupported mode {mode}")

    # Single MXU matmul; operands stay in the input dtype, accumulate in f32.
    y = jnp.dot(agg, wT_ref[...], preferred_element_type=jnp.float32)
    y = y + b_ref[...].astype(jnp.float32)                           # [1, Hop] bcast
    o_ref[...] = jnp.maximum(y, 0.0).astype(o_ref.dtype)


def la_aggregator(xs, params, mode, *, tile_n=512,
                  vmem_limit_bytes=32 * 1024 * 1024):
    """Pallas implementation of LaAggregator.forward (modes: att/max/sum/mean/cat)."""
    num_layers = len(xs)
    N, H = xs[0].shape
    dtype = xs[0].dtype
    H_out = params['lin_w'].shape[0]

    # Lane-dense padding + legal row tiling.
    Hp = _round_up(H, 128)
    Hop = _round_up(H_out, 128)
    tn = _round_up(max(8, min(tile_n, _round_up(N, 8))), 8)
    Np = _round_up(N, tn)
    grid_n = Np // tn

    lin_wT = jnp.transpose(params['lin_w'])                          # [H_in, H_out]
    lin_b = _pad_to(params['lin_b'].reshape(1, -1).astype(jnp.float32), (1, Hop))

    kernel = functools.partial(_la_agg_kernel, mode=mode, num_layers=num_layers)

    if mode == 'cat':
        # One [Np, L*Hp] slab -> one matmul with K = L*Hp (fills MXU depth).
        x = jnp.concatenate([_pad_to(xl, (Np, Hp)) for xl in xs], axis=1)
        wT = jnp.zeros((num_layers * Hp, Hop), dtype)
        for l in range(num_layers):
            wT = wT.at[l * Hp:l * Hp + H, :H_out].set(
                lin_wT[l * H:(l + 1) * H, :].astype(dtype))
        operands = (x, wT, lin_b)
        in_specs = [
            pl.BlockSpec((tn, num_layers * Hp), lambda i: (i, 0)),
            pl.BlockSpec(wT.shape, lambda i: (0, 0)),
            pl.BlockSpec((1, Hop), lambda i: (0, 0)),
        ]
    else:
        x = jnp.stack([_pad_to(xl, (Np, Hp)) for xl in xs], axis=0)  # [L, Np, Hp]
        wT = _pad_to(lin_wT.astype(dtype), (Hp, Hop))
        x_spec = pl.BlockSpec((num_layers, tn, Hp), lambda i: (0, i, 0))
        if mode == 'att':
            att_w = _pad_to(params['att_w'].reshape(1, -1).astype(dtype), (1, Hp))
            operands = (x, att_w, wT, lin_b)
            in_specs = [
                x_spec,
                pl.BlockSpec((1, Hp), lambda i: (0, 0)),
                pl.BlockSpec((Hp, Hop), lambda i: (0, 0)),
                pl.BlockSpec((1, Hop), lambda i: (0, 0)),
            ]
        else:
            operands = (x, wT, lin_b)
            in_specs = [
                x_spec,
                pl.BlockSpec((Hp, Hop), lambda i: (0, 0)),
                pl.BlockSpec((1, Hop), lambda i: (0, 0)),
            ]

    out = pl.pallas_call(
        kernel,
        out_shape=jax.ShapeDtypeStruct((Np, Hop), dtype),
        grid_spec=pltpu.PrefetchScalarGridSpec(
            num_scalar_prefetch=0,
            grid=(grid_n,),
            in_specs=in_specs,
            out_specs=pl.BlockSpec((tn, Hop), lambda i: (i, 0)),
        ),
        compiler_params=pltpu.CompilerParams(
            dimension_semantics=("parallel",),
            vmem_limit_bytes=vmem_limit_bytes),
    )(*operands)

    return out[:N, :H_out]


def _ref_forward(xs, params, mode):
    """Pure-JAX reference matching the PyTorch forward semantics."""
    if mode == 'max':
        out = jnp.max(jnp.stack(xs, axis=-1), axis=-1)
    elif mode == 'sum':
        out = jnp.sum(jnp.stack(xs, axis=-1), axis=-1)
    elif mode == 'mean':
        out = jnp.mean(jnp.stack(xs, axis=-1), axis=-1)
    elif mode == 'cat':
        out = jnp.concatenate(xs, axis=1)
    elif mode == 'att':
        inp = jnp.transpose(jnp.stack(xs, axis=-1), (0, 2, 1))       # [N, L, H]
        w = inp @ params['att_w'].T + params['att_b']                # [N, L, 1]
        w = jax.nn.softmax(w, axis=1)
        out = jnp.sum(jnp.transpose(inp * w, (0, 2, 1)), axis=-1)
    else:
        raise ValueError(mode)
    return jax.nn.relu(out @ params['lin_w'].T + params['lin_b'])


def _init_params(key, hidden, num_layers, mode):
    k1, k2, k3, k4 = jax.random.split(key, 4)
    h_in = hidden * num_layers if mode == 'cat' else hidden
    params = {
        'lin_w': 0.1 * jax.random.normal(k1, (hidden, h_in), jnp.float32),
        'lin_b': 0.1 * jax.random.normal(k2, (hidden,), jnp.float32),
    }
    if mode == 'att':
        params['att_w'] = 0.1 * jax.random.normal(k3, (1, hidden), jnp.float32)
        params['att_b'] = 0.1 * jax.random.normal(k4, (1,), jnp.float32)
    return params


if __name__ == "__main__":
    N, H, L = 256, 32, 3   # nodes, hidden_size, num_layers

    key = jax.random.PRNGKey(0)
    kx, kp = jax.random.split(key)
    xs = [jax.random.normal(jax.random.fold_in(kx, i), (N, H), jnp.float32)
          for i in range(L)]

    for m_idx, mode in enumerate(['att', 'max', 'sum', 'mean', 'cat']):
        params = _init_params(jax.random.fold_in(kp, m_idx), H, L, mode)
        # tile_n=64 -> grid=(4,): multiple pipelined steps even at this small N.
        out = la_aggregator(xs, params, mode, tile_n=64)
        out = jax.block_until_ready(out)
        ref = _ref_forward(xs, params, mode)
        assert out.shape == (N, H), (mode, out.shape)
        tol = 2e-3 if mode == 'att' else 1e-4   # approx reciprocal in softmax
        assert jnp.allclose(out, ref, atol=tol, rtol=tol), mode

    print("KERNEL_OK")
</pallas_src>

<mosaic_0001>
module attributes {stable_mosaic.version = 11 : i64} {
  func.func @_la_agg_kernel(%arg0: i32, %arg1: memref<3x64x128xf32, #tpu.memory_space<vmem>>, %arg2: memref<1x128xf32, #tpu.memory_space<vmem>>, %arg3: memref<128x128xf32, #tpu.memory_space<vmem>>, %arg4: memref<1x128xf32, #tpu.memory_space<vmem>>, %arg5: memref<64x128xf32, #tpu.memory_space<vmem>>) attributes {dimension_semantics = [#tpu.dimension_semantics<parallel>], iteration_bounds = array<i64: 4>, scalar_prefetch = 0 : i64, scratch_operands = 0 : i64, tpu.core_type = #tpu.core_type<tc>, window_params = [{transform_indices = @transform_0, window_bounds = array<i64: 3, 64, 128>}, {pipeline_mode = #tpu.pipeline_mode<synchronous>, transform_indices = @transform_1, window_bounds = array<i64: 1, 128>}, {pipeline_mode = #tpu.pipeline_mode<synchronous>, transform_indices = @transform_2, window_bounds = array<i64: 128, 128>}, {pipeline_mode = #tpu.pipeline_mode<synchronous>, transform_indices = @transform_3, window_bounds = array<i64: 1, 128>}, {transform_indices = @transform_4, window_bounds = array<i64: 64, 128>}]} {
    %c0 = arith.constant 0 : index
    %c0_0 = arith.constant 0 : index
    %c0_1 = arith.constant 0 : index
    %0 = vector.load %arg1[%c0, %c0_0, %c0_1] : memref<3x64x128xf32, #tpu.memory_space<vmem>>, vector<3x64x128xf32>
    %c0_2 = arith.constant 0 : index
    %c0_3 = arith.constant 0 : index
    %1 = vector.load %arg2[%c0_2, %c0_3] : memref<1x128xf32, #tpu.memory_space<vmem>>, vector<1x128xf32>
    %2 = vector.shape_cast %1 : vector<1x128xf32> to vector<1x1x128xf32>
    %3 = vector.broadcast %2 : vector<1x1x128xf32> to vector<3x64x128xf32>
    %4 = arith.mulf %0, %3 : vector<3x64x128xf32>
    %cst = arith.constant dense<0.000000e+00> : vector<3x64xf32>
    %5 = vector.multi_reduction <add>, %4, %cst [2] : vector<3x64x128xf32> to vector<3x64xf32>
    %6 = vector.shape_cast %5 : vector<3x64xf32> to vector<3x64x1xf32>
    %cst_4 = arith.constant dense<0xFF800000> : vector<64x1xf32>
    %7 = vector.multi_reduction <maximumf>, %6, %cst_4 [0] : vector<3x64x1xf32> to vector<64x1xf32>
    %8 = vector.shape_cast %7 : vector<64x1xf32> to vector<1x64x1xf32>
    %9 = vector.broadcast %8 : vector<1x64x1xf32> to vector<3x64x1xf32>
    %10 = arith.subf %6, %9 : vector<3x64x1xf32>
    %11 = math.exp %10 : vector<3x64x1xf32>
    %cst_5 = arith.constant dense<0.000000e+00> : vector<64x1xf32>
    %12 = vector.multi_reduction <add>, %11, %cst_5 [0] : vector<3x64x1xf32> to vector<64x1xf32>
    %13 = vector.shape_cast %12 : vector<64x1xf32> to vector<1x64x1xf32>
    %14 = tpu.reciprocal %13 {approx = true} : vector<1x64x1xf32> -> vector<1x64x1xf32>
    %15 = vector.broadcast %14 : vector<1x64x1xf32> to vector<3x64x1xf32>
    %16 = arith.mulf %11, %15 : vector<3x64x1xf32>
    %17 = vector.broadcast %16 : vector<3x64x1xf32> to vector<3x64x128xf32>
    %18 = arith.mulf %0, %17 : vector<3x64x128xf32>
    %cst_6 = arith.constant dense<0.000000e+00> : vector<64x128xf32>
    %19 = vector.multi_reduction <add>, %18, %cst_6 [0] : vector<3x64x128xf32> to vector<64x128xf32>
    %c0_7 = arith.constant 0 : index
    %c0_8 = arith.constant 0 : index
    %20 = vector.load %arg3[%c0_7, %c0_8] : memref<128x128xf32, #tpu.memory_space<vmem>>, vector<128x128xf32>
    %cst_9 = arith.constant dense<0.000000e+00> : vector<64x128xf32>
    %21 = tpu.matmul %19, %20, %cst_9 {dimension_numbers = #tpu.dot_dimension_numbers<[1], [0], [0], [1], [0, 0, 1, 1], [], []>} : vector<64x128xf32>, vector<128x128xf32>, vector<64x128xf32> -> vector<64x128xf32>
    %c0_10 = arith.constant 0 : index
    %c0_11 = arith.constant 0 : index
    %22 = vector.load %arg4[%c0_10, %c0_11] : memref<1x128xf32, #tpu.memory_space<vmem>>, vector<1x128xf32>
    %23 = vector.broadcast %22 : vector<1x128xf32> to vector<64x128xf32>
    %24 = arith.addf %21, %23 : vector<64x128xf32>
    %cst_12 = arith.constant 0.000000e+00 : f32
    %25 = vector.broadcast %cst_12 : f32 to vector<64x128xf32>
    %26 = arith.maximumf %24, %25 : vector<64x128xf32>
    %c0_13 = arith.constant 0 : index
    %c0_14 = arith.constant 0 : index
    %27 = vector.load %arg5[%c0_13, %c0_14] : memref<64x128xf32, #tpu.memory_space<vmem>>, vector<64x128xf32>
    tpu.vector_store %arg5[%c0_13, %c0_14], %26 {strides = array<i32>} : memref<64x128xf32, #tpu.memory_space<vmem>>, vector<64x128xf32>,
    return
  }
  func.func @transform_0(%arg0: i32) -> (i32, i32, i32) {
    %c0_i32 = arith.constant 0 : i32
    %c0_i32_0 = arith.constant 0 : i32
    %c0_i32_1 = arith.constant 0 : i32
    return %c0_i32, %arg0, %c0_i32_0 : i32, i32, i32
  }
  func.func @transform_1(%arg0: i32) -> (i32, i32) {
    %c0_i32 = arith.constant 0 : i32
    %c0_i32_0 = arith.constant 0 : i32
    %c0_i32_1 = arith.constant 0 : i32
    return %c0_i32, %c0_i32_0 : i32, i32
  }
  func.func @transform_2(%arg0: i32) -> (i32, i32) {
    %c0_i32 = arith.constant 0 : i32
    %c0_i32_0 = arith.constant 0 : i32
    %c0_i32_1 = arith.constant 0 : i32
    return %c0_i32, %c0_i32_0 : i32, i32
  }
  func.func @transform_3(%arg0: i32) -> (i32, i32) {
    %c0_i32 = arith.constant 0 : i32
    %c0_i32_0 = arith.constant 0 : i32
    %c0_i32_1 = arith.constant 0 : i32
    return %c0_i32, %c0_i32_0 : i32, i32
  }
  func.func @transform_4(%arg0: i32) -> (i32, i32) {
    %c0_i32 = arith.constant 0 : i32
    %c0_i32_0 = arith.constant 0 : i32
    return %arg0, %c0_i32 : i32, i32
  }
}

</mosaic_0001>

<llo_original>
// kernel: tpu_custom_call.1
$region0: #{tpu_custom_call.1}
  #allocation0 [shape = 'u32[]', space=smem, size = 0x4, offset = 0x4, fixed_abs, tag = 'smem constant byte address 0x4 - core index']
  #allocation1 [shape = 'u32[72,128]{1,0:T(1,128)}', space=vmem, size = 0x9000, scoped, tag = 'internal scratch']
  #allocation9 [shape = 's32[]', space=sflag, size = 0x4, offset = 0, fixed_abs, tag = 'sflag constant byte address 0x0 - dummy sync flag']
  %s0 = inlined_call_operand.hbm [shape: f32[3,256,128], index: 0, kind: input, shape index: {}]
  %s1 = inlined_call_operand.hbm [shape: f32[1,128], index: 1, kind: input, shape index: {}]
  %s2 = inlined_call_operand.hbm [shape: f32[128,128], index: 2, kind: input, shape index: {}]
  %s3 = inlined_call_operand.vmem [shape: f32[1,128], index: 3, kind: input, shape index: {}]
  %s4 = inlined_call_operand.hbm [shape: f32[256,128], index: 4, kind: output, shape index: {}]
  %s5 = sld [smem:[#allocation0]]
  $region61: #{tpu_custom_call.1} parent=0
    _
  %s7 = ssub.s32 1, %s5
  %s8 = scalar_select 0, %s7, %s5
  $region1: #{tpu_custom_call.1} parent=0
    #allocation2 [shape = 'u8[196608]{0}', space=vmem, size = 0x30000, scoped, tag = 'input window, operand 0']
    #allocation3 [shape = 's32[2]{0}', space=sflag, size = 0x8, scoped, tag = 'scoped memory for tpu_custom_call.1']
    #allocation4 [shape = 's32[2]{0}', space=sflag, size = 0x8, scoped, tag = 'scoped memory for tpu_custom_call.1']
    #allocation5 [shape = 'u8[512]{0}', space=vmem, size = 0x400, scoped, tag = 'input window, operand 1, single buffered']
    #allocation6 [shape = 's32[1]{0}', space=sflag, size = 0x4, scoped, tag = 'scoped memory for tpu_custom_call.1']
    #allocation7 [shape = 'u8[65536]{0}', space=vmem, size = 0x10000, scoped, tag = 'input window, operand 2, single buffered']
    #allocation8 [shape = 'u8[65536]{0}', space=vmem, size = 0x10000, scoped, tag = 'output window, operand 0']
    %9 = vsyncpa [#allocation3], 0
    %s10 = scalar_lea.sflag [#allocation3], 1
    %11 = vsyncpa %s10, 0
    %12 = vsyncpa [#allocation6], 0
    %13 = vsyncpa [#allocation4], 0
    %s14 = scalar_lea.sflag [#allocation4], 1
    %15 = vsyncpa %s14, 0
    loop: start=0, step=1, limit=6
    $region2: #{tpu_custom_call.1} parent=1 // loop_pre_header
      _
    $region3: #{tpu_custom_call.1} parent=1 // loop_header
      %s17 = sphi 0, %s21
      %p18 = scmp.ge.s32.totalorder %s17, 6
      %s27 = sphi 0, %s29
      %s30 = sphi 0, %s27
      %s31 = sphi 0, %s30
      %s47 = sphi 0, %s31
      %s51 = sphi 0, %s51
      %s53 = sphi 0, %s51
      %s54 = sphi 0, %s53
      %s68 = sphi 0, %s54
      %s72 = sphi 0, %s72
      %s74 = sphi 0, %s72
      %s75 = sphi 0, %s74
      %s89 = sphi 0, %s75
      %s93 = sphi 0, %s93
      %s95 = sphi 0, %s93
      %s96 = sphi 0, %s95
      %s110 = sphi 0, %s96
      %s116 = sphi 0, %s118
      %s119 = sphi 0, %s116
      %s120 = sphi 0, %s119
      %s136 = sphi 0, %s120
    $region4: #{tpu_custom_call.1} parent=1 // loop_header_branch
      %20 = sbr.rel (%p18) target = $region8
    $region5: #{tpu_custom_call.1} parent=1 // loop_body
      %s22 = ssub.s32 %s17, 1
      %s23 = ssub.s32 %s17, 2
      %s24 = sadd.s32 %s17, 1
      %s25 = ssub.s32 %s17, %s24
      %p26 = scmp.eq.s32.totalorder %s25, 0
      %s28 = sadd.s32 %s27, 1
      %s29 = scalar_select %p26, %s27, %s28
      %p32 = pneg %p26
      %p33 = scmp.eq.s32.totalorder %s17, 3
      %p34 = por %p32, %p33
      %p35 = scmp.ne.s32.totalorder %s27, %s30
      %p36 = scmp.eq.s32.totalorder %s17, 0
      %p37 = por %p35, %p36
      %p38 = scmp.ne.s32.totalorder %s27, %s30
      %p39 = scmp.eq.s32.totalorder %s22, 3
      %p40 = por %p38, %p39
      %p41 = scmp.ne.s32.totalorder %s30, %s31
      %p42 = scmp.eq.s32.totalorder %s22, 0
      %p43 = por %p41, %p42
      %p44 = scmp.ne.s32.totalorder %s30, %s31
      %p45 = scmp.eq.s32.totalorder %s23, 3
      %p46 = por %p44, %p45
      %p48 = scmp.ne.s32.totalorder %s31, %s47
      %p49 = scmp.eq.s32.totalorder %s23, 0
      %p50 = por %p48, %p49
      %s52 = sadd.s32 %s51, 1
      %p55 = scmp.eq.s32.totalorder %s17, 3
      %p56 = scmp.ne.s32.totalorder %s51, %s53
      %p57 = scmp.eq.s32.totalorder %s17, 0
      %p58 = por %p56, %p57
      %p59 = scmp.ne.s32.totalorder %s51, %s53
      %p60 = scmp.eq.s32.totalorder %s22, 3
      %p61 = por %p59, %p60
      %p62 = scmp.ne.s32.totalorder %s53, %s54
      %p63 = scmp.eq.s32.totalorder %s22, 0
      %p64 = por %p62, %p63
      %p65 = scmp.ne.s32.totalorder %s53, %s54
      %p66 = scmp.eq.s32.totalorder %s23, 3
      %p67 = por %p65, %p66
      %p69 = scmp.ne.s32.totalorder %s54, %s68
      %p70 = scmp.eq.s32.totalorder %s23, 0
      %p71 = por %p69, %p70
      %s73 = sadd.s32 %s72, 1
      %p76 = scmp.eq.s32.totalorder %s17, 3
      %p77 = scmp.ne.s32.totalorder %s72, %s74
      %p78 = scmp.eq.s32.totalorder %s17, 0
      %p79 = por %p77, %p78
      %p80 = scmp.ne.s32.totalorder %s72, %s74
      %p81 = scmp.eq.s32.totalorder %s22, 3
      %p82 = por %p80, %p81
      %p83 = scmp.ne.s32.totalorder %s74, %s75
      %p84 = scmp.eq.s32.totalorder %s22, 0
      %p85 = por %p83, %p84
      %p86 = scmp.ne.s32.totalorder %s74, %s75
      %p87 = scmp.eq.s32.totalorder %s23, 3
      %p88 = por %p86, %p87
      %p90 = scmp.ne.s32.totalorder %s75, %s89
      %p91 = scmp.eq.s32.totalorder %s23, 0
      %p92 = por %p90, %p91
      %s94 = sadd.s32 %s93, 1
      %p97 = scmp.eq.s32.totalorder %s17, 3
      %p98 = scmp.ne.s32.totalorder %s93, %s95
      %p99 = scmp.eq.s32.totalorder %s17, 0
      %p100 = por %p98, %p99
      %p101 = scmp.ne.s32.totalorder %s93, %s95
      %p102 = scmp.eq.s32.totalorder %s22, 3
      %p103 = por %p101, %p102
      %p104 = scmp.ne.s32.totalorder %s95, %s96
      %p105 = scmp.eq.s32.totalorder %s22, 0
      %p106 = por %p104, %p105
      %p107 = scmp.ne.s32.totalorder %s95, %s96
      %p108 = scmp.eq.s32.totalorder %s23, 3
      %p109 = por %p107, %p108
      %p111 = scmp.ne.s32.totalorder %s96, %s110
      %p112 = scmp.eq.s32.totalorder %s23, 0
      %p113 = por %p111, %p112
      %s114 = ssub.s32 %s17, %s24
      %p115 = scmp.eq.s32.totalorder %s114, 0
      %s117 = sadd.s32 %s116, 1
      %s118 = scalar_select %p115, %s116, %s117
      %p121 = pneg %p115
      %p122 = scmp.eq.s32.totalorder %s17, 3
      %p123 = por %p121, %p122
      %p124 = scmp.ne.s32.totalorder %s116, %s119
      %p125 = scmp.eq.s32.totalorder %s17, 0
      %p126 = por %p124, %p125
      %p127 = scmp.ne.s32.totalorder %s116, %s119
      %p128 = scmp.eq.s32.totalorder %s22, 3
      %p129 = por %p127, %p128
      %p130 = scmp.ne.s32.totalorder %s119, %s120
      %p131 = scmp.eq.s32.totalorder %s22, 0
      %p132 = por %p130, %p131
      %p133 = scmp.ne.s32.totalorder %s119, %s120
      %p134 = scmp.eq.s32.totalorder %s23, 3
      %p135 = por %p133, %p134
      %p137 = scmp.ne.s32.totalorder %s120, %s136
      %p138 = scmp.eq.s32.totalorder %s23, 0
      %p139 = por %p137, %p138
      %p140 = scmp.le.s32.totalorder 1, %s17
      %p141 = scmp.lt.s32.totalorder %s17, 5
      %p142 = pnand %p140, %p141
      %p143 = pneg %p142
      // Predicated region
      $region9: #{tpu_custom_call.1} parent=5 // pred_check
        _
      $region10: #{tpu_custom_call.1} parent=5 // pred_check_branch
        %145 = sbr.rel (%p142) target = $region12
      $region11: #{tpu_custom_call.1} parent=5 // pred_region
        %s146 = ssub.s32 %s17, 1
        // Predicated region
        $region13: #{tpu_custom_call.1} parent=11 // pred_check
          %p147 = pneg %p64
        $region14: #{tpu_custom_call.1} parent=11 // pred_check_branch
          %149 = sbr.rel (%p147) target = $region16
        $region15: #{tpu_custom_call.1} parent=11 // pred_region
          %151 = vsyncadd [#allocation6], 0
          %s153 = sshll.u32 %s1, 4
          %s154 = int_to_ptr.hbm [resolvable:$true] %s153
          %s155 = sshll.u32 [#allocation5], 4
          %s156 = int_to_ptr.vmem [resolvable:$true] %s155
          %158 = dma.hbm_to_vmem [thread:$0]  %s154, 16, %s156, [#allocation6]
        $region16: #{tpu_custom_call.1} parent=11 // pred_fallthru
          _
        // Predicated region
        $region17: #{tpu_custom_call.1} parent=11 // pred_check
          %p159 = pneg %p85
        $region18: #{tpu_custom_call.1} parent=11 // pred_check_branch
          %161 = sbr.rel (%p159) target = $region20
        $region19: #{tpu_custom_call.1} parent=11 // pred_region
          %163 = vsyncadd [#allocation6], 0
          %s164 = sshll.u32 %s2, 4
          %s165 = int_to_ptr.hbm [resolvable:$true] %s164
          %s166 = sshll.u32 [#allocation7], 4
          %s167 = int_to_ptr.vmem [resolvable:$true] %s166
          %172 = dma.hbm_to_vmem [thread:$0]  %s165, 2048, %s167, [#allocation6], 128, 128, 8
        $region20: #{tpu_custom_call.1} parent=11 // pred_fallthru
          _
        // Predicated region
        $region21: #{tpu_custom_call.1} parent=11 // pred_check
          %p173 = pneg %p106
        $region22: #{tpu_custom_call.1} parent=11 // pred_check_branch
          %175 = sbr.rel (%p173) target = $region24
        $region23: #{tpu_custom_call.1} parent=11 // pred_region
          _
        $region24: #{tpu_custom_call.1} parent=11 // pred_fallthru
          _
      $region12: #{tpu_custom_call.1} parent=5 // pred_fallthru
        _
      %p176 = scmp.lt.s32.totalorder %s17, 4
      // Predicated region
      $region25: #{tpu_custom_call.1} parent=5 // pred_check
        %p177 = pneg %p176
      $region26: #{tpu_custom_call.1} parent=5 // pred_check_branch
        %179 = sbr.rel (%p177) target = $region28
      $region27: #{tpu_custom_call.1} parent=5 // pred_region
        // Predicated region
        $region29: #{tpu_custom_call.1} parent=27 // pred_check
          %p180 = pneg %p37
        $region30: #{tpu_custom_call.1} parent=27 // pred_check_branch
          %182 = sbr.rel (%p180) target = $region32
        $region31: #{tpu_custom_call.1} parent=27 // pred_region
          #allocation10 [shape = 'u32[6]{0}', space=smem, size = 0x18, scoped, tag = 'DMA stride descriptor']
          %s183 = sand.u32 %s27, 1
          %s184 = scalar_lea.sflag [#allocation3], %s183
          %s185 = sand.u32 %s27, 1
          %s186 = smul.addr %s185, 192
          %s187 = scalar_lea.vmem [#allocation2], %s186
          %s188 = smul.u32 8, %s17
          %190 = vsyncadd %s184, 0
          %s191 = smul.addr %s188, 8
          %s192 = scalar_lea.hbm %s0, %s191
          %s194 = sshll.u32 1, 14
          %s195 = sxor.u32 4294967295, %s194
          %s197 = sld [smem:[#allocation0]]
          %s198 = sadd.s32 2, %s197
          %s200 = sshll.u32 7, 26
          %s201 = sxor.u32 4294967295, %s200
          %s202 = sand.u32 0, %s201
          %s203 = sshll.u32 %s198, 26
          %s204 = sor.u32 %s202, %s203
          %s205 = sshll.u32 %s192, 4
          %s206 = int_to_ptr.hbm [resolvable:$true] %s205
          %s207 = sshll.u32 %s187, 4
          %s208 = int_to_ptr.vmem [resolvable:$true] %s207
          %214 = sst [smem:[#allocation10]] 4096
          %s215 = scalar_lea.smem [#allocation10], 1
          %216 = sst [smem:[%s215]] 1024
          %s217 = scalar_lea.smem [#allocation10], 2
          %218 = sst [smem:[%s217]] 8
          %s219 = scalar_lea.smem [#allocation10], 3
          %220 = sst [smem:[%s219]] 128
          %s221 = scalar_lea.smem [#allocation10], 4
          %222 = sst [smem:[%s221]] 128
          %s223 = scalar_lea.smem [#allocation10], 5
          %224 = sst [smem:[%s223]] 8
          %226 = dma.general %s206, 3072, %s208, %s184, [#allocation9], [#allocation10], %s204, 0
        $region32: #{tpu_custom_call.1} parent=27 // pred_fallthru
          _
      $region28: #{tpu_custom_call.1} parent=5 // pred_fallthru
        _
      %p227 = scmp.le.s32.totalorder 1, %s17
      %p228 = scmp.lt.s32.totalorder %s17, 5
      %p229 = pnand %p227, %p228
      %p230 = pneg %p229
      // Predicated region
      $region33: #{tpu_custom_call.1} parent=5 // pred_check
        _
      $region34: #{tpu_custom_call.1} parent=5 // pred_check_branch
        %232 = sbr.rel (%p229) target = $region36
      $region35: #{tpu_custom_call.1} parent=5 // pred_region
        %s233 = ssub.s32 %s17, 1
        %s234 = sand.u32 %s30, 1
        %s235 = scalar_lea.sflag [#allocation3], %s234
        %s236 = sand.u32 %s30, 1
        %s237 = smul.addr %s236, 192
        %s238 = scalar_lea.vmem [#allocation2], %s237
        // Predicated region
        $region37: #{tpu_custom_call.1} parent=35 // pred_check
          %p239 = pneg %p43
        $region38: #{tpu_custom_call.1} parent=35 // pred_check_branch
          %241 = sbr.rel (%p239) target = $region40
        $region39: #{tpu_custom_call.1} parent=35 // pred_region
          %243 = dma.done %s235, 3072
        $region40: #{tpu_custom_call.1} parent=35 // pred_fallthru
          _
        // Predicated region
        $region41: #{tpu_custom_call.1} parent=35 // pred_check
          %p244 = pneg %p64
        $region42: #{tpu_custom_call.1} parent=35 // pred_check_branch
          %246 = sbr.rel (%p244) target = $region44
        $region43: #{tpu_custom_call.1} parent=35 // pred_region
          %248 = dma.done [#allocation6], 16
        $region44: #{tpu_custom_call.1} parent=35 // pred_fallthru
          _
        // Predicated region
        $region45: #{tpu_custom_call.1} parent=35 // pred_check
          %p249 = pneg %p85
        $region46: #{tpu_custom_call.1} parent=35 // pred_check_branch
          %251 = sbr.rel (%p249) target = $region48
        $region47: #{tpu_custom_call.1} parent=35 // pred_region
          %253 = dma.done [#allocation6], 2048
        $region48: #{tpu_custom_call.1} parent=35 // pred_fallthru
          _
        %s254 = sand.u32 %s30, 1
        %s255 = scalar_lea.sflag [#allocation3], %s254
        %s256 = sand.u32 %s30, 1
        %s257 = smul.addr %s256, 192
        %s258 = scalar_lea.vmem [#allocation2], %s257
        %p259 = pneg %p43
        %p260 = pneg %p40
        %p261 = pneg %p64
        %p262 = pneg %p61
        %p263 = pneg %p85
        %p264 = pneg %p82
        %p265 = pneg %p106
        %p266 = pneg %p103
        %p267 = pneg %p132
        %p268 = pneg %p129
        %s269 = sand.u32 %s119, 1
        %s270 = scalar_lea.sflag [#allocation4], %s269
        %s271 = sand.u32 %s119, 1
        %s272 = smul.addr %s271, 64
        %s273 = scalar_lea.vmem [#allocation8], %s272
        %s274 = smul.u32 8, %s22
        %s275 = smul.u32 8, %s22
        %v276 = vld [vmem:[%s238] sm:$0xff]
        %v277 = vld [vmem:[%s238 + $0x8] sm:$0xff]
        %v278 = vld [vmem:[%s238 + $0x10] sm:$0xff]
        %v279 = vld [vmem:[%s238 + $0x18] sm:$0xff]
        %v280 = vld [vmem:[%s238 + $0x20] sm:$0xff]
        %v281 = vld [vmem:[%s238 + $0x28] sm:$0xff]
        %v282 = vld [vmem:[%s238 + $0x30] sm:$0xff]
        %v283 = vld [vmem:[%s238 + $0x38] sm:$0xff]
        %v284 = vld [vmem:[%s238 + $0x40] sm:$0xff]
        %v285 = vld [vmem:[%s238 + $0x48] sm:$0xff]
        %v286 = vld [vmem:[%s238 + $0x50] sm:$0xff]
        %v287 = vld [vmem:[%s238 + $0x58] sm:$0xff]
        %v288 = vld [vmem:[%s238 + $0x60] sm:$0xff]
        %v289 = vld [vmem:[%s238 + $0x68] sm:$0xff]
        %v290 = vld [vmem:[%s238 + $0x70] sm:$0xff]
        %v291 = vld [vmem:[%s238 + $0x78] sm:$0xff]
        %v292 = vld [vmem:[%s238 + $0x80] sm:$0xff]
        %v293 = vld [vmem:[%s238 + $0x88] sm:$0xff]
        %v294 = vld [vmem:[%s238 + $0x90] sm:$0xff]
        %v295 = vld [vmem:[%s238 + $0x98] sm:$0xff]
        %v296 = vld [vmem:[%s238 + $0xa0] sm:$0xff]
        %v297 = vld [vmem:[%s238 + $0xa8] sm:$0xff]
        %v298 = vld [vmem:[%s238 + $0xb0] sm:$0xff]
        %v299 = vld [vmem:[%s238 + $0xb8] sm:$0xff]
        %v300 = vld [vmem:[#allocation5] sm:$0x1]
        %v302 = vperm.slane %v300, 0
        %v304 = vmul.f32 %v276, %v302
        %v305 = vmul.f32 %v277, %v302
        %v306 = vmul.f32 %v278, %v302
        %v307 = vmul.f32 %v279, %v302
        %v308 = vmul.f32 %v280, %v302
        %v309 = vmul.f32 %v281, %v302
        %v310 = vmul.f32 %v282, %v302
        %v311 = vmul.f32 %v283, %v302
        %v312 = vmul.f32 %v284, %v302
        %v313 = vmul.f32 %v285, %v302
        %v314 = vmul.f32 %v286, %v302
        %v315 = vmul.f32 %v287, %v302
        %v316 = vmul.f32 %v288, %v302
        %v317 = vmul.f32 %v289, %v302
        %v318 = vmul.f32 %v290, %v302
        %v319 = vmul.f32 %v291, %v302
        %v320 = vmul.f32 %v292, %v302
        %v321 = vmul.f32 %v293, %v302
        %v322 = vmul.f32 %v294, %v302
        %v323 = vmul.f32 %v295, %v302
        %v324 = vmul.f32 %v296, %v302
        %v325 = vmul.f32 %v297, %v302
        %v326 = vmul.f32 %v298, %v302
        %v327 = vmul.f32 %v299, %v302
        %328 = vadd.xlane.f32.xlu0 %v304
        %v329 = vpop.xlane.xlu0 %328
        %330 = vadd.xlane.f32.xlu0 %v305
        %v331 = vpop.xlane.xlu0 %330
        %332 = vadd.xlane.f32.xlu0 %v306
        %v333 = vpop.xlane.xlu0 %332
        %334 = vadd.xlane.f32.xlu0 %v307
        %v335 = vpop.xlane.xlu0 %334
        %336 = vadd.xlane.f32.xlu0 %v308
        %v337 = vpop.xlane.xlu0 %336
        %338 = vadd.xlane.f32.xlu0 %v309
        %v339 = vpop.xlane.xlu0 %338
        %340 = vadd.xlane.f32.xlu0 %v310
        %v341 = vpop.xlane.xlu0 %340
        %342 = vadd.xlane.f32.xlu0 %v311
        %v343 = vpop.xlane.xlu0 %342
        %344 = vadd.xlane.f32.xlu0 %v312
        %v345 = vpop.xlane.xlu0 %344
        %346 = vadd.xlane.f32.xlu0 %v313
        %v347 = vpop.xlane.xlu0 %346
        %348 = vadd.xlane.f32.xlu0 %v314
        %v349 = vpop.xlane.xlu0 %348
        %350 = vadd.xlane.f32.xlu0 %v315
        %v351 = vpop.xlane.xlu0 %350
        %352 = vadd.xlane.f32.xlu0 %v316
        %v353 = vpop.xlane.xlu0 %352
        %354 = vadd.xlane.f32.xlu0 %v317
        %v355 = vpop.xlane.xlu0 %354
        %356 = vadd.xlane.f32.xlu0 %v318
        %v357 = vpop.xlane.xlu0 %356
        %358 = vadd.xlane.f32.xlu0 %v319
        %v359 = vpop.xlane.xlu0 %358
        %360 = vadd.xlane.f32.xlu0 %v320
        %v361 = vpop.xlane.xlu0 %360
        %362 = vadd.xlane.f32.xlu0 %v321
        %v363 = vpop.xlane.xlu0 %362
        %364 = vadd.xlane.f32.xlu0 %v322
        %v365 = vpop.xlane.xlu0 %364
        %366 = vadd.xlane.f32.xlu0 %v323
        %v367 = vpop.xlane.xlu0 %366
        %368 = vadd.xlane.f32.xlu0 %v324
        %v369 = vpop.xlane.xlu0 %368
        %370 = vadd.xlane.f32.xlu0 %v325
        %v371 = vpop.xlane.xlu0 %370
        %372 = vadd.xlane.f32.xlu0 %v326
        %v373 = vpop.xlane.xlu0 %372
        %374 = vadd.xlane.f32.xlu0 %v327
        %v375 = vpop.xlane.xlu0 %374
        %v376 = vmax.f32 %v329, %v345
        %v377 = vmax.f32 %v376, %v361
        %v378 = vmax.f32 %v331, %v347
        %v379 = vmax.f32 %v378, %v363
        %v380 = vmax.f32 %v333, %v349
        %v381 = vmax.f32 %v380, %v365
        %v382 = vmax.f32 %v335, %v351
        %v383 = vmax.f32 %v382, %v367
        %v384 = vmax.f32 %v337, %v353
        %v385 = vmax.f32 %v384, %v369
        %v386 = vmax.f32 %v339, %v355
        %v387 = vmax.f32 %v386, %v371
        %v388 = vmax.f32 %v341, %v357
        %v389 = vmax.f32 %v388, %v373
        %v390 = vmax.f32 %v343, %v359
        %v391 = vmax.f32 %v390, %v375
        %v392 = vsub.f32 %v329, %v377
        %v393 = vsub.f32 %v331, %v379
        %v394 = vsub.f32 %v333, %v381
        %v395 = vsub.f32 %v335, %v383
        %v396 = vsub.f32 %v337, %v385
        %v397 = vsub.f32 %v339, %v387
        %v398 = vsub.f32 %v341, %v389
        %v399 = vsub.f32 %v343, %v391
        %v400 = vsub.f32 %v345, %v377
        %v401 = vsub.f32 %v347, %v379
        %v402 = vsub.f32 %v349, %v381
        %v403 = vsub.f32 %v351, %v383
        %v404 = vsub.f32 %v353, %v385
        %v405 = vsub.f32 %v355, %v387
        %v406 = vsub.f32 %v357, %v389
        %v407 = vsub.f32 %v359, %v391
        %v408 = vsub.f32 %v361, %v377
        %v409 = vsub.f32 %v363, %v379
        %v410 = vsub.f32 %v365, %v381
        %v411 = vsub.f32 %v367, %v383
        %v412 = vsub.f32 %v369, %v385
        %v413 = vsub.f32 %v371, %v387
        %v414 = vsub.f32 %v373, %v389
        %v415 = vsub.f32 %v375, %v391
        %v416 = vmul.f32 %v392, 1.442695
        %v417 = vpow.pop %v416
        %v418 = vmul.f32 %v393, 1.442695
        %v419 = vpow.pop %v418
        %v420 = vmul.f32 %v394, 1.442695
        %v421 = vpow.pop %v420
        %v422 = vmul.f32 %v395, 1.442695
        %v423 = vpow.pop %v422
        %v424 = vmul.f32 %v396, 1.442695
        %v425 = vpow.pop %v424
        %v426 = vmul.f32 %v397, 1.442695
        %v427 = vpow.pop %v426
        %v428 = vmul.f32 %v398, 1.442695
        %v429 = vpow.pop %v428
        %v430 = vmul.f32 %v399, 1.442695
        %v431 = vpow.pop %v430
        %v432 = vmul.f32 %v400, 1.442695
        %v433 = vpow.pop %v432
        %v434 = vmul.f32 %v401, 1.442695
        %v435 = vpow.pop %v434
        %v436 = vmul.f32 %v402, 1.442695
        %v437 = vpow.pop %v436
        %v438 = vmul.f32 %v403, 1.442695
        %v439 = vpow.pop %v438
        %v440 = vmul.f32 %v404, 1.442695
        %v441 = vpow.pop %v440
        %v442 = vmul.f32 %v405, 1.442695
        %v443 = vpow.pop %v442
        %v444 = vmul.f32 %v406, 1.442695
        %v445 = vpow.pop %v444
        %v446 = vmul.f32 %v407, 1.442695
        %v447 = vpow.pop %v446
        %v448 = vmul.f32 %v408, 1.442695
        %v449 = vpow.pop %v448
        %v450 = vmul.f32 %v409, 1.442695
        %v451 = vpow.pop %v450
        %v452 = vmul.f32 %v410, 1.442695
        %v453 = vpow.pop %v452
        %v454 = vmul.f32 %v411, 1.442695
        %v455 = vpow.pop %v454
        %v456 = vmul.f32 %v412, 1.442695
        %v457 = vpow.pop %v456
        %v458 = vmul.f32 %v413, 1.442695
        %v459 = vpow.pop %v458
        %v460 = vmul.f32 %v414, 1.442695
        %v461 = vpow.pop %v460
        %v462 = vmul.f32 %v415, 1.442695
        %v463 = vpow.pop %v462
        %v464 = vadd.f32 %v417, %v433
        %v465 = vadd.f32 %v464, %v449
        %v466 = vadd.f32 %v419, %v435
        %v467 = vadd.f32 %v466, %v451
        %v468 = vadd.f32 %v421, %v437
        %v469 = vadd.f32 %v468, %v453
        %v470 = vadd.f32 %v423, %v439
        %v471 = vadd.f32 %v470, %v455
        %v472 = vadd.f32 %v425, %v441
        %v473 = vadd.f32 %v472, %v457
        %v474 = vadd.f32 %v427, %v443
        %v475 = vadd.f32 %v474, %v459
        %v476 = vadd.f32 %v429, %v445
        %v477 = vadd.f32 %v476, %v461
        %v478 = vadd.f32 %v431, %v447
        %v479 = vadd.f32 %v478, %v463
        %v480 = vrcp.pop %v465
        %v481 = vrcp.pop %v467
        %v482 = vrcp.pop %v469
        %v483 = vrcp.pop %v471
        %v484 = vrcp.pop %v473
        %v485 = vrcp.pop %v475
        %v486 = vrcp.pop %v477
        %v487 = vrcp.pop %v479
        %v488 = vmul.f32 %v417, %v480
        %v489 = vmul.f32 %v419, %v481
        %v490 = vmul.f32 %v421, %v482
        %v491 = vmul.f32 %v423, %v483
        %v492 = vmul.f32 %v425, %v484
        %v493 = vmul.f32 %v427, %v485
        %v494 = vmul.f32 %v429, %v486
        %v495 = vmul.f32 %v431, %v487
        %v496 = vmul.f32 %v433, %v480
        %v497 = vmul.f32 %v435, %v481
        %v498 = vmul.f32 %v437, %v482
        %v499 = vmul.f32 %v439, %v483
        %v500 = vmul.f32 %v441, %v484
        %v501 = vmul.f32 %v443, %v485
        %v502 = vmul.f32 %v445, %v486
        %v503 = vmul.f32 %v447, %v487
        %v504 = vmul.f32 %v449, %v480
        %v505 = vmul.f32 %v451, %v481
        %v506 = vmul.f32 %v453, %v482
        %v507 = vmul.f32 %v455, %v483
        %v508 = vmul.f32 %v457, %v484
        %v509 = vmul.f32 %v459, %v485
        %v510 = vmul.f32 %v461, %v486
        %v511 = vmul.f32 %v463, %v487
        %v512 = vmul.f32 %v276, %v488
        %v513 = vmul.f32 %v277, %v489
        %v514 = vmul.f32 %v278, %v490
        %v515 = vmul.f32 %v279, %v491
        %v516 = vmul.f32 %v280, %v492
        %v517 = vmul.f32 %v281, %v493
        %v518 = vmul.f32 %v282, %v494
        %v519 = vmul.f32 %v283, %v495
        %v520 = vmul.f32 %v284, %v496
        %v521 = vmul.f32 %v285, %v497
        %v522 = vmul.f32 %v286, %v498
        %v523 = vmul.f32 %v287, %v499
        %v524 = vmul.f32 %v288, %v500
        %v525 = vmul.f32 %v289, %v501
        %v526 = vmul.f32 %v290, %v502
        %v527 = vmul.f32 %v291, %v503
        %v528 = vmul.f32 %v292, %v504
        %v529 = vmul.f32 %v293, %v505
        %v530 = vmul.f32 %v294, %v506
        %v531 = vmul.f32 %v295, %v507
        %v532 = vmul.f32 %v296, %v508
        %v533 = vmul.f32 %v297, %v509
        %v534 = vmul.f32 %v298, %v510
        %v535 = vmul.f32 %v299, %v511
        %v536 = vadd.f32 %v512, %v520
        %v537 = vadd.f32 %v536, %v528
        %v538 = vadd.f32 %v513, %v521
        %v539 = vadd.f32 %v538, %v529
        %v540 = vadd.f32 %v514, %v522
        %v541 = vadd.f32 %v540, %v530
        %v542 = vadd.f32 %v515, %v523
        %v543 = vadd.f32 %v542, %v531
        %v544 = vadd.f32 %v516, %v524
        %v545 = vadd.f32 %v544, %v532
        %v546 = vadd.f32 %v517, %v525
        %v547 = vadd.f32 %v546, %v533
        %v548 = vadd.f32 %v518, %v526
        %v549 = vadd.f32 %v548, %v534
        %v550 = vadd.f32 %v519, %v527
        %v551 = vadd.f32 %v550, %v535
        %v552 = vld [vmem:[#allocation7] sm:$0xff]
        %v553 = vld [vmem:[#allocation7 + $0x8] sm:$0xff]
        %v554 = vld [vmem:[#allocation7 + $0x10] sm:$0xff]
        %v555 = vld [vmem:[#allocation7 + $0x18] sm:$0xff]
        %v556 = vld [vmem:[#allocation7 + $0x20] sm:$0xff]
        %v557 = vld [vmem:[#allocation7 + $0x28] sm:$0xff]
        %v558 = vld [vmem:[#allocation7 + $0x30] sm:$0xff]
        %v559 = vld [vmem:[#allocation7 + $0x38] sm:$0xff]
        %v560 = vld [vmem:[#allocation7 + $0x40] sm:$0xff]
        %v561 = vld [vmem:[#allocation7 + $0x48] sm:$0xff]
        %v562 = vld [vmem:[#allocation7 + $0x50] sm:$0xff]
        %v563 = vld [vmem:[#allocation7 + $0x58] sm:$0xff]
        %v564 = vld [vmem:[#allocation7 + $0x60] sm:$0xff]
        %v565 = vld [vmem:[#allocation7 + $0x68] sm:$0xff]
        %v566 = vld [vmem:[#allocation7 + $0x70] sm:$0xff]
        %v567 = vld [vmem:[#allocation7 + $0x78] sm:$0xff]
        %v568 = vld [vmem:[%s3] sm:$0x1]
        %v570 = vperm.slane %v568, 0
        %572 = vmatpush.msra.mxu0 %v567
        %573 = vmatpush.msra.mxu0 %v566
        %574 = vmatpush.msra.mxu0 %v565
        %575 = vmatpush.msra.mxu0 %v564
        %576 = vmatpush.msra.mxu0 %v563
        %577 = vmatpush.msra.mxu0 %v562
        %578 = vmatpush.msra.mxu0 %v561
        %579 = vmatpush.msra.mxu0 %v560
        %580 = vmatpush.msra.mxu0 %v559
        %581 = vmatpush.msra.mxu0 %v558
        %582 = vmatpush.msra.mxu0 %v557
        %583 = vmatpush.msra.mxu0 %v556
        %584 = vmatpush.msra.mxu0 %v555
        %585 = vmatpush.msra.mxu0 %v554
        %586 = vmatpush.msra.mxu0 %v553
        %587 = vmatpush.msra.mxu0 %v552
        %588 = vmatmul.f32.gmra.mxu0 %v537
        %v589 = vpop.f32.mrf.mxu0
        %v590 = vadd.f32 %v570, %v589
        %591 = vmatmul.f32.gmra.mxu0 %v539
        %v592 = vpop.f32.mrf.mxu0
        %v593 = vadd.f32 %v570, %v592
        %594 = vmatmul.f32.gmra.mxu0 %v541
        %v595 = vpop.f32.mrf.mxu0
        %v596 = vadd.f32 %v570, %v595
        %597 = vmatmul.f32.gmra.mxu0 %v543
        %v598 = vpop.f32.mrf.mxu0
        %v599 = vadd.f32 %v570, %v598
        %600 = vmatmul.f32.gmra.mxu0 %v545
        %v601 = vpop.f32.mrf.mxu0
        %v602 = vadd.f32 %v570, %v601
        %603 = vmatmul.f32.gmra.mxu0 %v547
        %v604 = vpop.f32.mrf.mxu0
        %v605 = vadd.f32 %v570, %v604
        %606 = vmatmul.f32.gmra.mxu0 %v549
        %v607 = vpop.f32.mrf.mxu0
        %v608 = vadd.f32 %v570, %v607
        %609 = vmatmul.f32.gmra.mxu0 %v551
        %v610 = vpop.f32.mrf.mxu0
        %v611 = vadd.f32 %v570, %v610
        %612 = vdwg.mxu0
        %v613 = vmax.f32 %v590, 0.0
        %v614 = vmax.f32 %v593, 0.0
        %v615 = vmax.f32 %v596, 0.0
        %v616 = vmax.f32 %v599, 0.0
        %v617 = vmax.f32 %v602, 0.0
        %v618 = vmax.f32 %v605, 0.0
        %v619 = vmax.f32 %v608, 0.0
        %v620 = vmax.f32 %v611, 0.0
        %621 = vst [vmem:[%s273] sm:$0xff] %v613
        %622 = vst [vmem:[%s273 + $0x8] sm:$0xff] %v614
        %623 = vst [vmem:[%s273 + $0x10] sm:$0xff] %v615
        %624 = vst [vmem:[%s273 + $0x18] sm:$0xff] %v616
        %625 = vst [vmem:[%s273 + $0x20] sm:$0xff] %v617
        %626 = vst [vmem:[%s273 + $0x28] sm:$0xff] %v618
        %627 = vst [vmem:[%s273 + $0x30] sm:$0xff] %v619
        %628 = vst [vmem:[%s273 + $0x38] sm:$0xff] %v620
        %s629 = sand.u32 %s119, 1
        %s630 = scalar_lea.sflag [#allocation4], %s629
        %s631 = sand.u32 %s119, 1
        %s632 = smul.addr %s631, 64
        %s633 = scalar_lea.vmem [#allocation8], %s632
        // Predicated region
        $region49: #{tpu_custom_call.1} parent=35 // pred_check
          %p634 = pneg %p129
        $region50: #{tpu_custom_call.1} parent=35 // pred_check_branch
          %636 = sbr.rel (%p634) target = $region52
        $region51: #{tpu_custom_call.1} parent=35 // pred_region
          %s637 = smul.u32 8, %s22
          %639 = vsyncadd %s630, 0
          %s640 = smul.addr %s637, 8
          %s641 = scalar_lea.hbm %s4, %s640
          %s642 = sshll.u32 %s633, 4
          %s643 = int_to_ptr.vmem [resolvable:$true] %s642
          %s644 = sshll.u32 %s641, 4
          %s645 = int_to_ptr.hbm [resolvable:$true] %s644
          %650 = dma.vmem_to_hbm [thread:$0]  %s643, 1024, %s645, %s630, 128, 128, 8
        $region52: #{tpu_custom_call.1} parent=35 // pred_fallthru
          _
      $region36: #{tpu_custom_call.1} parent=5 // pred_fallthru
        _
      %p651 = scmp.le.s32.totalorder 2, %s17
      // Predicated region
      $region53: #{tpu_custom_call.1} parent=5 // pred_check
        %p652 = pneg %p651
      $region54: #{tpu_custom_call.1} parent=5 // pred_check_branch
        %654 = sbr.rel (%p652) target = $region56
      $region55: #{tpu_custom_call.1} parent=5 // pred_region
        %s655 = ssub.s32 %s17, 2
        // Predicated region
        $region57: #{tpu_custom_call.1} parent=55 // pred_check
          %p656 = pneg %p135
        $region58: #{tpu_custom_call.1} parent=55 // pred_check_branch
          %658 = sbr.rel (%p656) target = $region60
        $region59: #{tpu_custom_call.1} parent=55 // pred_region
          %s659 = sand.u32 %s120, 1
          %s660 = scalar_lea.sflag [#allocation4], %s659
          %s661 = sand.u32 %s120, 1
          %s662 = smul.addr %s661, 64
          %s663 = scalar_lea.vmem [#allocation8], %s662
          %665 = dma.done %s660, 1024
        $region60: #{tpu_custom_call.1} parent=55 // pred_fallthru
          _
      $region56: #{tpu_custom_call.1} parent=5 // pred_fallthru
        _
    $region6: #{tpu_custom_call.1} parent=1 // loop_footer
      %s21 = sadd.s32 1, %s17
    $region7: #{tpu_custom_call.1} parent=1 // loop_footer_branch
      %16 = sbr.rel target = $region3
    $region8: #{tpu_custom_call.1} parent=1 // loop_exit
      _
    %666 = vsyncpa [#allocation3], 1
    %s667 = scalar_lea.sflag [#allocation3], 1
    %668 = vsyncpa %s667, 1
    %669 = vsyncpa [#allocation6], 1
    %670 = vsyncpa [#allocation4], 1
    %s671 = scalar_lea.sflag [#allocation4], 1
    %672 = vsyncpa %s671, 1

</llo_original>
